<compile_context>
chip_gen: v7x
topology: tpu7x:2x2x1
jax: 0.10.0
libtpu: 0.0.40
codegen_flags: <defaults>
</compile_context>

<pallas_src>
import jax
import jax.numpy as jnp
from jax.experimental import pallas as pl
from jax.experimental.pallas import tpu as pltpu

IN_FEATURES = 13
OUT_FEATURES = 512


def _round_up(n, m):
    return ((n + m - 1) // m) * m


def _max_tile_rows():
    # Generation-aware batch-tile cap.
    #  * v7x: 64 MiB physical VMEM, ~3.2 TB/s HBM -> a 1024-row tile is only
    #    ~0.65us of writeback, so per-step overhead dominates; use 2048 rows
    #    (~2 x (4 MiB out + 1 MiB lane-padded x) double-buffered = ~10 MiB,
    #    inside the 32 MiB scoped-VMEM default).
    #  * v5e/v6e: 128 MiB VMEM but lower HBM BW -> 1024 rows already amortizes
    #    step overhead; bigger tiles only add VMEM pressure (v5e default 16 MiB).
    try:
        vmem = pltpu.get_tpu_info().vmem_capacity_bytes
    except Exception:
        return 1024
    return 2048 if vmem <= 64 * 1024 * 1024 else 1024


_MAX_TILE_B = _max_tile_rows()


def linear_kernel(x_ref, wt_ref, b_ref, o_ref):
    # x (tile_b, 13), wt (13, 512) VMEM-resident, b (1, 512) resident,
    # out (tile_b, 512). Single MXU pass with f32 accumulation + bias add.
    acc = jnp.dot(x_ref[...], wt_ref[...], preferred_element_type=jnp.float32)
    o_ref[...] = (acc + b_ref[...]).astype(o_ref.dtype)


@jax.jit
def object_linear(x, weight_t, bias):
    """x: [B, 13] f32; weight_t: [13, 512] f32 (pre-transposed); bias: [512] f32.

    Computes x @ weight_t + bias  ==  PyTorch's  x @ W.T + b  with W [512, 13].
    """
    B = x.shape[0]

    # Balanced batch tiling (no host-side padding / slicing).
    num_tiles = pl.cdiv(B, _MAX_TILE_B)
    if num_tiles == 1 and B >= 1024:
        # Guarantee >=2 grid steps for large batches so the "parallel" axis can
        # shard across both TensorCores on v7x (near-free on 1-TC chips since a
        # 512+-row tile already sits at the HBM roofline).
        num_tiles = 2
    tile_b = _round_up(pl.cdiv(B, num_tiles), 8)   # f32 sublane multiple
    grid = (pl.cdiv(B, tile_b),)

    b2 = bias.reshape(1, OUT_FEATURES)  # 2-D for TPU layout

    cost = pl.CostEstimate(
        flops=2 * B * IN_FEATURES * OUT_FEATURES,
        transcendentals=0,
        bytes_accessed=4 * (B * (IN_FEATURES + OUT_FEATURES)
                            + IN_FEATURES * OUT_FEATURES
                            + OUT_FEATURES),
    )

    out = pl.pallas_call(
        linear_kernel,
        out_shape=jax.ShapeDtypeStruct((B, OUT_FEATURES), x.dtype),
        grid=grid,
        in_specs=[
            # x: one batch tile per grid step (pipelined / double-buffered).
            # The last (partial) tile's OOB rows are read as padding and only
            # feed output rows that Pallas never writes back.
            pl.BlockSpec((tile_b, IN_FEATURES), lambda i: (i, 0)),
            # weight & bias: constant block index -> fetched once, VMEM-resident.
            pl.BlockSpec((IN_FEATURES, OUT_FEATURES), lambda i: (0, 0)),
            pl.BlockSpec((1, OUT_FEATURES), lambda i: (0, 0)),
        ],
        out_specs=pl.BlockSpec((tile_b, OUT_FEATURES), lambda i: (i, 0)),
        compiler_params=pltpu.CompilerParams(
            dimension_semantics=("parallel",)),
        cost_estimate=cost,
    )(x, weight_t, b2)

    return out


def init_params(key):
    # Deterministic init mimicking nn.Linear's default: U(-k, k), k = 1/sqrt(fan_in).
    # Weight is stored pre-transposed as [13, 512]; hot path never transposes.
    kw, kb = jax.random.split(key)
    bound = 1.0 / (IN_FEATURES ** 0.5)
    weight = jax.random.uniform(
        kw, (OUT_FEATURES, IN_FEATURES), jnp.float32, -bound, bound)
    bias = jax.random.uniform(
        kb, (OUT_FEATURES,), jnp.float32, -bound, bound)
    weight_t = weight.T
    return weight_t, bias


if __name__ == "__main__":
    key = jax.random.PRNGKey(0)
    kx, kp = jax.random.split(key)
    weight_t, bias = init_params(kp)

    # Small batch (single full tile).
    B = 8
    x = jax.random.normal(kx, (B, IN_FEATURES), jnp.float32)
    out = jax.block_until_ready(object_linear(x, weight_t, bias))
    ref = x @ weight_t + bias
    assert out.shape == (B, OUT_FEATURES)
    assert jnp.allclose(out, ref, atol=1e-4, rtol=1e-4)

    # Larger, non-multiple-of-tile batch: exercises balanced tiling + the
    # masked partial last block (no pad / slice path anymore).
    B2 = 2500
    x2 = jax.random.normal(kx, (B2, IN_FEATURES), jnp.float32)
    out2 = jax.block_until_ready(object_linear(x2, weight_t, bias))
    ref2 = x2 @ weight_t + bias
    assert out2.shape == (B2, OUT_FEATURES)
    assert jnp.allclose(out2, ref2, atol=1e-4, rtol=1e-4)

    print("KERNEL_OK")
</pallas_src>

<mosaic_0001>
module attributes {stable_mosaic.version = 11 : i64} {
  func.func @linear_kernel(%arg0: i32, %arg1: memref<8x13xf32, #tpu.memory_space<vmem>>, %arg2: memref<13x512xf32, #tpu.memory_space<vmem>>, %arg3: memref<1x512xf32, #tpu.memory_space<vmem>>, %arg4: memref<8x512xf32, #tpu.memory_space<vmem>>) attributes {dimension_semantics = [#tpu.dimension_semantics<parallel>], iteration_bounds = array<i64: 1>, scalar_prefetch = 0 : i64, scratch_operands = 0 : i64, tpu.core_type = #tpu.core_type<tc>, window_params = [{transform_indices = @transform_0, window_bounds = array<i64: 8, 13>}, {pipeline_mode = #tpu.pipeline_mode<synchronous>, transform_indices = @transform_1, window_bounds = array<i64: 13, 512>}, {pipeline_mode = #tpu.pipeline_mode<synchronous>, transform_indices = @transform_2, window_bounds = array<i64: 1, 512>}, {transform_indices = @transform_3, window_bounds = array<i64: 8, 512>}]} {
    %c0 = arith.constant 0 : index
    %c0_0 = arith.constant 0 : index
    %0 = vector.load %arg1[%c0, %c0_0] : memref<8x13xf32, #tpu.memory_space<vmem>>, vector<8x13xf32>
    %c0_1 = arith.constant 0 : index
    %c0_2 = arith.constant 0 : index
    %1 = vector.load %arg2[%c0_1, %c0_2] : memref<13x512xf32, #tpu.memory_space<vmem>>, vector<13x512xf32>
    %cst = arith.constant dense<0.000000e+00> : vector<8x512xf32>
    %2 = tpu.matmul %0, %1, %cst {dimension_numbers = #tpu.dot_dimension_numbers<[1], [0], [0], [1], [0, 0, 1, 1], [], []>} : vector<8x13xf32>, vector<13x512xf32>, vector<8x512xf32> -> vector<8x512xf32>
    %c0_3 = arith.constant 0 : index
    %c0_4 = arith.constant 0 : index
    %3 = vector.load %arg3[%c0_3, %c0_4] : memref<1x512xf32, #tpu.memory_space<vmem>>, vector<1x512xf32>
    %4 = vector.broadcast %3 : vector<1x512xf32> to vector<8x512xf32>
    %5 = arith.addf %2, %4 : vector<8x512xf32>
    %c0_5 = arith.constant 0 : index
    %c0_6 = arith.constant 0 : index
    %6 = vector.load %arg4[%c0_5, %c0_6] : memref<8x512xf32, #tpu.memory_space<vmem>>, vector<8x512xf32>
    tpu.vector_store %arg4[%c0_5, %c0_6], %5 {strides = array<i32>} : memref<8x512xf32, #tpu.memory_space<vmem>>, vector<8x512xf32>,
    return
  }
  func.func @transform_0(%arg0: i32) -> (i32, i32) {
    %c0_i32 = arith.constant 0 : i32
    %c0_i32_0 = arith.constant 0 : i32
    return %arg0, %c0_i32 : i32, i32
  }
  func.func @transform_1(%arg0: i32) -> (i32, i32) {
    %c0_i32 = arith.constant 0 : i32
    %c0_i32_0 = arith.constant 0 : i32
    %c0_i32_1 = arith.constant 0 : i32
    return %c0_i32, %c0_i32_0 : i32, i32
  }
  func.func @transform_2(%arg0: i32) -> (i32, i32) {
    %c0_i32 = arith.constant 0 : i32
    %c0_i32_0 = arith.constant 0 : i32
    %c0_i32_1 = arith.constant 0 : i32
    return %c0_i32, %c0_i32_0 : i32, i32
  }
  func.func @transform_3(%arg0: i32) -> (i32, i32) {
    %c0_i32 = arith.constant 0 : i32
    %c0_i32_0 = arith.constant 0 : i32
    return %arg0, %c0_i32 : i32, i32
  }
}

</mosaic_0001>

<llo_original>
// kernel: object_linear.1
$region0: #{object_linear.1}
  #allocation0 [shape = 'u32[]', space=smem, size = 0x4, offset = 0x4, fixed_abs, tag = 'smem constant byte address 0x4 - core index']
  #allocation1 [shape = 'u32[144,128]{1,0:T(1,128)}', space=vmem, size = 0x12000, scoped, tag = 'internal scratch']
  %s0 = inlined_call_operand.hbm [shape: f32[8,13], index: 0, kind: input, shape index: {}]
  %s1 = inlined_call_operand.hbm [shape: f32[13,512], index: 1, kind: input, shape index: {}]
  %s2 = inlined_call_operand.vmem [shape: f32[1,512], index: 2, kind: input, shape index: {}]
  %s3 = inlined_call_operand.hbm [shape: f32[8,512], index: 3, kind: output, shape index: {}]
  %s4 = sld [smem:[#allocation0]]
  $region30: #{object_linear.1} parent=0
    _
  %s6 = ssub.s32 1, %s4
  %s7 = scalar_select 0, %s6, %s4
  $region1: #{object_linear.1} parent=0
    #allocation2 [shape = 'u8[4096]{0}', space=vmem, size = 0x1000, scoped, tag = 'input window, operand 0, single buffered']
    #allocation3 [shape = 's32[1]{0}', space=sflag, size = 0x4, scoped, tag = 'scoped memory for object_linear.1']
    #allocation4 [shape = 's32[1]{0}', space=sflag, size = 0x4, scoped, tag = 'scoped memory for object_linear.1']
    #allocation5 [shape = 'u8[32768]{0}', space=vmem, size = 0x8000, scoped, tag = 'input window, operand 1, single buffered']
    #allocation6 [shape = 's32[1]{0}', space=sflag, size = 0x4, scoped, tag = 'scoped memory for object_linear.1']
    #allocation7 [shape = 'u8[16384]{0}', space=vmem, size = 0x4000, scoped, tag = 'output window, operand 0, single buffered']
    %8 = vsyncpa [#allocation3], 0
    %9 = vsyncpa [#allocation6], 0
    %10 = vsyncpa [#allocation4], 0
    // Predicated region
    $region2: #{object_linear.1} parent=1 // pred_check
      _
    $region3: #{object_linear.1} parent=1 // pred_check_branch
      %12 = sbr.rel (0) target = $region5
    $region4: #{object_linear.1} parent=1 // pred_region
      %s14 = ssub.s32 128, 128
      %15 = vsyncadd [#allocation3], %s14
      %s17 = sshll.u32 [#allocation2], 4
      %s18 = int_to_ptr.vmem [resolvable:$true] %s17
      %20 = dma.hbm_to_vmem [thread:$0]  %s0, 128, %s18, [#allocation3]
    $region5: #{object_linear.1} parent=1 // pred_fallthru
      _
    // Predicated region
    $region6: #{object_linear.1} parent=1 // pred_check
      _
    $region7: #{object_linear.1} parent=1 // pred_check_branch
      %22 = sbr.rel (0) target = $region9
    $region8: #{object_linear.1} parent=1 // pred_region
      %s24 = ssub.s32 1024, 1024
      %25 = vsyncadd [#allocation6], %s24
      %s26 = sshll.u32 [#allocation5], 4
      %s27 = int_to_ptr.vmem [resolvable:$true] %s26
      %32 = dma.hbm_to_vmem [thread:$0]  %s1, 1024, %s27, [#allocation6], 512, 512, 32
    $region9: #{object_linear.1} parent=1 // pred_fallthru
      _
    // Predicated region
    $region10: #{object_linear.1} parent=1 // pred_check
      _
    $region11: #{object_linear.1} parent=1 // pred_check_branch
      %34 = sbr.rel (0) target = $region13
    $region12: #{object_linear.1} parent=1 // pred_region
      _
    $region13: #{object_linear.1} parent=1 // pred_fallthru
      _
    // Predicated region
    $region14: #{object_linear.1} parent=1 // pred_check
      _
    $region15: #{object_linear.1} parent=1 // pred_check_branch
      %36 = sbr.rel (0) target = $region17
    $region16: #{object_linear.1} parent=1 // pred_region
      %37 = dma.done [#allocation3], 128
    $region17: #{object_linear.1} parent=1 // pred_fallthru
      _
    // Predicated region
    $region18: #{object_linear.1} parent=1 // pred_check
      _
    $region19: #{object_linear.1} parent=1 // pred_check_branch
      %39 = sbr.rel (0) target = $region21
    $region20: #{object_linear.1} parent=1 // pred_region
      %40 = dma.done [#allocation6], 1024
    $region21: #{object_linear.1} parent=1 // pred_fallthru
      _
    %v41 = vld [vmem:[#allocation2] sm:$0xff]
    %v42 = vld [vmem:[#allocation5] sm:$0xff]
    %v43 = vld [vmem:[#allocation5 + $0x8] sm:$0xff]
    %v44 = vld [vmem:[#allocation5 + $0x10] sm:$0xff]
    %v45 = vld [vmem:[#allocation5 + $0x18] sm:$0xff]
    %v46 = vld [vmem:[#allocation5 + $0x20] sm:$0x1f]
    %v47 = vld [vmem:[#allocation5 + $0x28] sm:$0x1f]
    %v48 = vld [vmem:[#allocation5 + $0x30] sm:$0x1f]
    %v49 = vld [vmem:[#allocation5 + $0x38] sm:$0x1f]
    %v50 = vld [vmem:[%s2] sm:$0xf]
    %v52 = vlaneseq
    %v53 = vshrl.u32 %v52, 7
    %v54 = vsub.s32 0, %v53
    %v55 = vrot.slane %v50, %v54
    %v56 = vlaneseq
    %v57 = vshrl.u32 %v56, 7
    %v58 = vsub.s32 1, %v57
    %v59 = vrot.slane %v50, %v58
    %v60 = vlaneseq
    %v61 = vshrl.u32 %v60, 7
    %v62 = vsub.s32 2, %v61
    %v63 = vrot.slane %v50, %v62
    %v64 = vlaneseq
    %v65 = vshrl.u32 %v64, 7
    %v66 = vsub.s32 3, %v65
    %v67 = vrot.slane %v50, %v66
    %vm72 = vcmask 105472
    %v74 = vsel %vm72, %v41, 0
    %vm76 = vcmask 1044480
    %v78 = vsel %vm76, %v46, 0
    %v81 = vsel %vm76, %v47, 0
    %v84 = vsel %vm76, %v48, 0
    %v87 = vsel %vm76, %v49, 0
    %89 = vmatprep.subr.mxu0 %v43
    %90 = vmatpush1.msra.mxu0 %v42
    %91 = vmatprep.subr.mxu0 %v81
    %92 = vmatpush1.msra.mxu0 %v78
    %93 = vmatprep.subr.mxu0 0.0
    %94 = vmatpush1.msra.mxu0 0.0
    %95 = vmatprep.subr.mxu0 0.0
    %96 = vmatpush1.msra.mxu0 0.0
    %97 = vmatprep.subr.mxu0 0.0
    %98 = vmatpush1.msra.mxu0 0.0
    %99 = vmatprep.subr.mxu0 0.0
    %100 = vmatpush1.msra.mxu0 0.0
    %101 = vmatprep.subr.mxu0 0.0
    %102 = vmatpush1.msra.mxu0 0.0
    %103 = vmatprep.subr.mxu0 0.0
    %104 = vmatpush1.msra.mxu0 0.0
    %105 = vmatprep.subr.mxu0 0.0
    %106 = vmatpush1.msra.mxu0 0.0
    %107 = vmatprep.subr.mxu0 0.0
    %108 = vmatpush1.msra.mxu0 0.0
    %109 = vmatprep.subr.mxu0 0.0
    %110 = vmatpush1.msra.mxu0 0.0
    %111 = vmatprep.subr.mxu0 0.0
    %112 = vmatpush1.msra.mxu0 0.0
    %113 = vmatprep.subr.mxu0 0.0
    %114 = vmatpush1.msra.mxu0 0.0
    %115 = vmatprep.subr.mxu0 0.0
    %116 = vmatpush1.msra.mxu0 0.0
    %117 = vmatprep.subr.mxu0 0.0
    %118 = vmatpush1.msra.mxu0 0.0
    %119 = vmatprep.subr.mxu0 0.0
    %120 = vmatpush1.msra.mxu0 0.0
    %121 = vmatprep.subr.mxu0 0.0
    %122 = vmatpush1.msra.mxu0 0.0
    %123 = vmatprep.subr.mxu0 0.0
    %124 = vmatpush1.msra.mxu0 0.0
    %125 = vmatprep.subr.mxu0 0.0
    %126 = vmatpush1.msra.mxu0 0.0
    %127 = vmatprep.subr.mxu0 0.0
    %128 = vmatpush1.msra.mxu0 0.0
    %129 = vmatprep.subr.mxu0 0.0
    %130 = vmatpush1.msra.mxu0 0.0
    %131 = vmatprep.subr.mxu0 0.0
    %132 = vmatpush1.msra.mxu0 0.0
    %133 = vmatprep.subr.mxu0 0.0
    %134 = vmatpush1.msra.mxu0 0.0
    %135 = vmatprep.subr.mxu0 0.0
    %136 = vmatpush1.msra.mxu0 0.0
    %137 = vmatprep.subr.mxu0 0.0
    %138 = vmatpush1.msra.mxu0 0.0
    %139 = vmatprep.subr.mxu0 0.0
    %140 = vmatpush1.msra.mxu0 0.0
    %141 = vmatprep.subr.mxu0 0.0
    %142 = vmatpush1.msra.mxu0 0.0
    %143 = vmatprep.subr.mxu0 0.0
    %144 = vmatpush1.msra.mxu0 0.0
    %145 = vmatprep.subr.mxu0 0.0
    %146 = vmatpush1.msra.mxu0 0.0
    %147 = vmatprep.subr.mxu0 0.0
    %148 = vmatpush1.msra.mxu0 0.0
    %149 = vmatprep.subr.mxu0 0.0
    %150 = vmatpush1.msra.mxu0 0.0
    %151 = vmatprep.subr.mxu0 0.0
    %152 = vmatpush1.msra.mxu0 0.0
    %153 = vmatprep.mubr.f32.mxu0 0.0
    %154 = vmatmul.mubr.f32.gmra.mrb[0].mxu0 %v74
    %v155 = vpop.f32.mrb[0].mxu0
    %v156 = vadd.f32 %v55, %v155
    %v157 = vpop.f32.mrb[0].mxu0
    %v158 = vadd.f32 %v59, %v157
    %159 = vdwg.mxu0
    %160 = vmatprep.subr.mxu0 %v45
    %161 = vmatpush1.msra.mxu0 %v44
    %162 = vmatprep.subr.mxu0 %v87
    %163 = vmatpush1.msra.mxu0 %v84
    %164 = vmatprep.subr.mxu0 0.0
    %165 = vmatpush1.msra.mxu0 0.0
    %166 = vmatprep.subr.mxu0 0.0
    %167 = vmatpush1.msra.mxu0 0.0
    %168 = vmatprep.subr.mxu0 0.0
    %169 = vmatpush1.msra.mxu0 0.0
    %170 = vmatprep.subr.mxu0 0.0
    %171 = vmatpush1.msra.mxu0 0.0
    %172 = vmatprep.subr.mxu0 0.0
    %173 = vmatpush1.msra.mxu0 0.0
    %174 = vmatprep.subr.mxu0 0.0
    %175 = vmatpush1.msra.mxu0 0.0
    %176 = vmatprep.subr.mxu0 0.0
    %177 = vmatpush1.msra.mxu0 0.0
    %178 = vmatprep.subr.mxu0 0.0
    %179 = vmatpush1.msra.mxu0 0.0
    %180 = vmatprep.subr.mxu0 0.0
    %181 = vmatpush1.msra.mxu0 0.0
    %182 = vmatprep.subr.mxu0 0.0
    %183 = vmatpush1.msra.mxu0 0.0
    %184 = vmatprep.subr.mxu0 0.0
    %185 = vmatpush1.msra.mxu0 0.0
    %186 = vmatprep.subr.mxu0 0.0
    %187 = vmatpush1.msra.mxu0 0.0
    %188 = vmatprep.subr.mxu0 0.0
    %189 = vmatpush1.msra.mxu0 0.0
    %190 = vmatprep.subr.mxu0 0.0
    %191 = vmatpush1.msra.mxu0 0.0
    %192 = vmatprep.subr.mxu0 0.0
    %193 = vmatpush1.msra.mxu0 0.0
    %194 = vmatprep.subr.mxu0 0.0
    %195 = vmatpush1.msra.mxu0 0.0
    %196 = vmatprep.subr.mxu0 0.0
    %197 = vmatpush1.msra.mxu0 0.0
    %198 = vmatprep.subr.mxu0 0.0
    %199 = vmatpush1.msra.mxu0 0.0
    %200 = vmatprep.subr.mxu0 0.0
    %201 = vmatpush1.msra.mxu0 0.0
    %202 = vmatprep.subr.mxu0 0.0
    %203 = vmatpush1.msra.mxu0 0.0
    %204 = vmatprep.subr.mxu0 0.0
    %205 = vmatpush1.msra.mxu0 0.0
    %206 = vmatprep.subr.mxu0 0.0
    %207 = vmatpush1.msra.mxu0 0.0
    %208 = vmatprep.subr.mxu0 0.0
    %209 = vmatpush1.msra.mxu0 0.0
    %210 = vmatprep.subr.mxu0 0.0
    %211 = vmatpush1.msra.mxu0 0.0
    %212 = vmatprep.subr.mxu0 0.0
    %213 = vmatpush1.msra.mxu0 0.0
    %214 = vmatprep.subr.mxu0 0.0
    %215 = vmatpush1.msra.mxu0 0.0
    %216 = vmatprep.subr.mxu0 0.0
    %217 = vmatpush1.msra.mxu0 0.0
    %218 = vmatprep.subr.mxu0 0.0
    %219 = vmatpush1.msra.mxu0 0.0
    %220 = vmatprep.subr.mxu0 0.0
    %221 = vmatpush1.msra.mxu0 0.0
    %222 = vmatprep.subr.mxu0 0.0
    %223 = vmatpush1.msra.mxu0 0.0
    %224 = vmatprep.mubr.f32.mxu0 0.0
    %225 = vmatmul.mubr.f32.gmra.mrb[0].mxu0 %v74
    %v226 = vpop.f32.mrb[0].mxu0
    %v227 = vadd.f32 %v63, %v226
    %v228 = vpop.f32.mrb[0].mxu0
    %v229 = vadd.f32 %v67, %v228
    %230 = vdwg.mxu0
    %231 = vst [vmem:[#allocation7] sm:$0xff] %v156
    %232 = vst [vmem:[#allocation7 + $0x8] sm:$0xff] %v158
    %233 = vst [vmem:[#allocation7 + $0x10] sm:$0xff] %v227
    %234 = vst [vmem:[#allocation7 + $0x18] sm:$0xff] %v229
    // Predicated region
    $region22: #{object_linear.1} parent=1 // pred_check
      _
    $region23: #{object_linear.1} parent=1 // pred_check_branch
      %236 = sbr.rel (0) target = $region25
    $region24: #{object_linear.1} parent=1 // pred_region
      %s238 = ssub.s32 512, 512
      %239 = vsyncadd [#allocation4], %s238
      %s241 = sshll.u32 [#allocation7], 4
      %s242 = int_to_ptr.vmem [resolvable:$true] %s241
      %244 = dma.vmem_to_hbm [thread:$0]  %s242, 512, %s3, [#allocation4]
    $region25: #{object_linear.1} parent=1 // pred_fallthru
      _
    // Predicated region
    $region26: #{object_linear.1} parent=1 // pred_check
      _
    $region27: #{object_linear.1} parent=1 // pred_check_branch
      %246 = sbr.rel (0) target = $region29
    $region28: #{object_linear.1} parent=1 // pred_region
      %247 = dma.done [#allocation4], 512
    $region29: #{object_linear.1} parent=1 // pred_fallthru
      _
    %248 = vsyncpa [#allocation3], 1
    %249 = vsyncpa [#allocation6], 1
    %250 = vsyncpa [#allocation4], 1

</llo_original>
